<compile_context>
chip_gen: v6e
topology: v6e:2x2x1
jax: 0.10.0
libtpu: 0.0.40
codegen_flags: <defaults>
</compile_context>

<pallas_src>
import functools

import jax
import jax.numpy as jnp
from jax.experimental import pallas as pl
from jax.experimental.pallas import tpu as pltpu


# Wide, lane-dense slab widths to try (largest first).
_LANE_CANDIDATES = (4096, 2048, 1024, 512, 256, 128)
# Per-block VMEM budget: 8 MiB -> 2 arrays x 2 buffers = 32 MiB working set.
_MAX_BLOCK_BYTES = 8 * 1024 * 1024
# Explicit scoped-VMEM limit: covers the 32 MiB working set + internal scratch,
# and stays under v7x's 64 MiB physical VMEM per TensorCore.
_VMEM_LIMIT_BYTES = 48 * 1024 * 1024


def _device_kind() -> str:
    try:
        return jax.devices()[0].device_kind.lower()
    except Exception:  # pragma: no cover - defensive; fall back to safe defaults
        return ""


def _pick_compute_dtype(dtype):
    """bf16-native compute only where the VPU/EUP support it (v6e / v7x)."""
    if dtype == jnp.bfloat16:
        kind = _device_kind()
        if ("v6" in kind) or ("v7" in kind):
            return jnp.bfloat16
    return jnp.float32


def _trans_sigmoid_kernel(params_ref, x_ref, o_ref, *, compute_dtype):
    # params_ref (SMEM, f32): [low, high - low]
    low = params_ref[0].astype(compute_dtype)
    scale = params_ref[1].astype(compute_dtype)
    x = x_ref[...].astype(compute_dtype)
    # sigmoid lowers to the EUP transcendental unit; the op stays HBM-bound.
    y = jax.nn.sigmoid(x) * scale + low
    o_ref[...] = y.astype(o_ref.dtype)


def _run_slab(x2d, low, high, compute_dtype):
    """Run the kernel over a (rows, lanes) slab; lanes is a multiple of 128."""
    rows, lanes = x2d.shape
    dtype = x2d.dtype
    itemsize = jnp.dtype(dtype).itemsize

    # dtype-aware minimum sublane multiple: f32 -> 8, bf16 -> 16, 8-bit -> 32.
    sub_mult = {4: 8, 2: 16, 1: 32}.get(itemsize, 8)
    max_rows = max(
        sub_mult,
        (_MAX_BLOCK_BYTES // (lanes * itemsize)) // sub_mult * sub_mult,
    )

    if rows <= max_rows:
        block_rows = rows
    else:
        # Prefer a block_rows that divides rows so the final grid step is a
        # full (unmasked) store; fall back to max_rows (masked tail is correct).
        block_rows = max_rows
        r = max_rows
        lower = max(sub_mult, max_rows // 2)
        while r >= lower:
            if rows % r == 0:
                block_rows = r
                break
            r -= sub_mult

    num_blocks = pl.cdiv(rows, block_rows)

    # v7x has 2 TensorCores per chip; "parallel" alone does not engage both —
    # use CORE_PARALLEL when the grid splits evenly across them.
    kind = _device_kind()
    if "v7" in kind and num_blocks >= 2 and num_blocks % 2 == 0:
        semantics = (pltpu.CORE_PARALLEL,)
    else:
        semantics = ("parallel",)

    n = rows * lanes
    cost = pl.CostEstimate(
        flops=4 * n,
        transcendentals=n,
        bytes_accessed=2 * n * itemsize,
    )

    params = jnp.array([low, high - low], dtype=jnp.float32)
    kernel = functools.partial(_trans_sigmoid_kernel, compute_dtype=compute_dtype)

    return pl.pallas_call(
        kernel,
        out_shape=jax.ShapeDtypeStruct((rows, lanes), dtype),
        grid=(num_blocks,),
        in_specs=[
            # low / scale live in SMEM: reusable kernel, free scalar reads.
            pl.BlockSpec(memory_space=pltpu.MemorySpace.SMEM),
            pl.BlockSpec((block_rows, lanes), lambda i: (i, 0)),
        ],
        out_specs=pl.BlockSpec((block_rows, lanes), lambda i: (i, 0)),
        compiler_params=pltpu.CompilerParams(
            dimension_semantics=semantics,
            vmem_limit_bytes=_VMEM_LIMIT_BYTES,
        ),
        cost_estimate=cost,
    )(params, x2d)


def trans_sigmoid(x, low, high):
    """Elementwise sigmoid(x) * (high - low) + low via a Pallas TPU kernel.

    x: any shape / float dtype (NCHW in the reference usage).
    """
    orig_shape = x.shape
    orig_dtype = x.dtype
    n_elem = x.size
    if n_elem == 0:
        return x

    compute_dtype = _pick_compute_dtype(orig_dtype)
    flat = x.reshape(-1)

    # Main path: pick the widest lane dimension that divides the element count
    # so the reshape is free layout plumbing (no pad, no extra HBM copy).
    lanes = None
    for cand in _LANE_CANDIDATES:
        if n_elem % cand == 0:
            lanes = cand
            break

    if lanes is not None:
        out2d = _run_slab(flat.reshape(n_elem // lanes, lanes), low, high,
                          compute_dtype)
        return out2d.reshape(orig_shape)

    # Ragged fallback (rare): kernel on the largest lane-divisible prefix,
    # plain jnp on the (< lanes)-element tail.  No jnp.pad -> no extra HBM pass.
    def _jnp_ref(v):
        vf = v.astype(jnp.float32)
        return (jax.nn.sigmoid(vf) * (high - low) + low).astype(orig_dtype)

    lanes = None
    for cand in _LANE_CANDIDATES:
        if n_elem >= cand:
            lanes = cand
            break
    if lanes is None:
        # Fewer than 128 elements: not worth a kernel launch.
        return _jnp_ref(flat).reshape(orig_shape)

    n_main = (n_elem // lanes) * lanes
    head = _run_slab(flat[:n_main].reshape(n_main // lanes, lanes), low, high,
                     compute_dtype).reshape(-1)
    tail = _jnp_ref(flat[n_main:])
    return jnp.concatenate([head, tail]).reshape(orig_shape)


if __name__ == "__main__":
    key = jax.random.PRNGKey(0)
    # Small NCHW input consistent with the module's intended use.
    x = jax.random.normal(key, (2, 4, 16, 16), dtype=jnp.float32)

    low, high = -1.0, 2.0
    out = trans_sigmoid(x, low, high)
    out = jax.block_until_ready(out)

    # Reference check against plain JAX.
    ref = jax.nn.sigmoid(x) * (high - low) + low
    assert out.shape == x.shape and out.dtype == x.dtype
    assert jnp.allclose(out, ref, atol=1e-6, rtol=1e-6)

    print("KERNEL_OK")
</pallas_src>

<mosaic_0001>
module attributes {stable_mosaic.version = 11 : i64} {
  func.func @_trans_sigmoid_kernel(%arg0: i32, %arg1: memref<2xf32, #tpu.memory_space<smem>>, %arg2: memref<1x2048xf32, #tpu.memory_space<vmem>>, %arg3: memref<1x2048xf32, #tpu.memory_space<vmem>>) attributes {dimension_semantics = [#tpu.dimension_semantics<parallel>], iteration_bounds = array<i64: 1>, scalar_prefetch = 0 : i64, scratch_operands = 0 : i64, tpu.core_type = #tpu.core_type<tc>, window_params = [{transform_indices = @transform_0, window_bounds = array<i64: 2>}, {transform_indices = @transform_1, window_bounds = array<i64: 1, 2048>}, {transform_indices = @transform_2, window_bounds = array<i64: 1, 2048>}]} {
    %c0 = arith.constant 0 : index
    %0 = memref.load %arg1[%c0] : memref<2xf32, #tpu.memory_space<smem>>
    %c1 = arith.constant 1 : index
    %1 = memref.load %arg1[%c1] : memref<2xf32, #tpu.memory_space<smem>>
    %c0_0 = arith.constant 0 : index
    %c0_1 = arith.constant 0 : index
    %2 = vector.load %arg2[%c0_0, %c0_1] : memref<1x2048xf32, #tpu.memory_space<vmem>>, vector<1x2048xf32>
    %3 = arith.negf %2 : vector<1x2048xf32>
    %4 = math.exp %3 : vector<1x2048xf32>
    %cst = arith.constant 1.000000e+00 : f32
    %5 = vector.broadcast %cst : f32 to vector<1x2048xf32>
    %6 = arith.addf %5, %4 : vector<1x2048xf32>
    %7 = arith.divf %5, %6 : vector<1x2048xf32>
    %8 = vector.broadcast %1 : f32 to vector<1x2048xf32>
    %9 = arith.mulf %7, %8 : vector<1x2048xf32>
    %10 = vector.broadcast %0 : f32 to vector<1x2048xf32>
    %11 = arith.addf %9, %10 : vector<1x2048xf32>
    %c0_2 = arith.constant 0 : index
    %c0_3 = arith.constant 0 : index
    %12 = vector.load %arg3[%c0_2, %c0_3] : memref<1x2048xf32, #tpu.memory_space<vmem>>, vector<1x2048xf32>
    tpu.vector_store %arg3[%c0_2, %c0_3], %11 {strides = array<i32>} : memref<1x2048xf32, #tpu.memory_space<vmem>>, vector<1x2048xf32>,
    return
  }
  func.func @transform_0(%arg0: i32) -> i32 {
    %c0_i32 = arith.constant 0 : i32
    %c0_i32_0 = arith.constant 0 : i32
    return %c0_i32 : i32
  }
  func.func @transform_1(%arg0: i32) -> (i32, i32) {
    %c0_i32 = arith.constant 0 : i32
    %c0_i32_0 = arith.constant 0 : i32
    return %arg0, %c0_i32 : i32, i32
  }
  func.func @transform_2(%arg0: i32) -> (i32, i32) {
    %c0_i32 = arith.constant 0 : i32
    %c0_i32_0 = arith.constant 0 : i32
    return %arg0, %c0_i32 : i32, i32
  }
}

</mosaic_0001>

<llo_original>
// kernel: tpu_custom_call.1
$region0: #{tpu_custom_call.1}
  #allocation0 [shape = 'u32[]', space=smem, size = 0x4, offset = 0x4, fixed_abs, tag = 'smem constant byte address 0x4 - core index']
  #allocation1 [shape = 'u32[144,128]{1,0:T(1,128)}', space=vmem, size = 0x12000, scoped, tag = 'internal scratch']
  %s0 = inlined_call_operand.hbm [shape: f32[2], index: 0, kind: input, shape index: {}]
  %s1 = inlined_call_operand.hbm [shape: f32[1,2048], index: 1, kind: input, shape index: {}]
  %s2 = inlined_call_operand.hbm [shape: f32[1,2048], index: 2, kind: output, shape index: {}]
  %s3 = sld [smem:[#allocation0]]
  $region26: #{tpu_custom_call.1} parent=0
    _
  %s5 = ssub.s32 1, %s3
  %s6 = scalar_select 0, %s5, %s3
  $region1: #{tpu_custom_call.1} parent=0
    #allocation2 [shape = 'u8[512]{0}', space=smem, size = 0x200, scoped, tag = 'input window, operand 0, single buffered']
    #allocation3 [shape = 's32[1]{0}', space=sflag, size = 0x4, scoped, tag = 'scoped memory for tpu_custom_call.1']
    #allocation4 [shape = 's32[1]{0}', space=sflag, size = 0x4, scoped, tag = 'scoped memory for tpu_custom_call.1']
    #allocation5 [shape = 's32[1]{0}', space=sflag, size = 0x4, scoped, tag = 'scoped memory for tpu_custom_call.1']
    #allocation6 [shape = 'u8[8192]{0}', space=vmem, size = 0x2000, scoped, tag = 'input window, operand 1, single buffered']
    #allocation7 [shape = 'u8[8192]{0}', space=vmem, size = 0x2000, scoped, tag = 'output window, operand 0, single buffered']
    %7 = vsyncpa [#allocation5], 0
    %8 = vsyncpa [#allocation3], 0
    %9 = vsyncpa [#allocation4], 0
    // Predicated region
    $region2: #{tpu_custom_call.1} parent=1 // pred_check
      _
    $region3: #{tpu_custom_call.1} parent=1 // pred_check_branch
      %11 = sbr.rel (0) target = $region5
    $region4: #{tpu_custom_call.1} parent=1 // pred_region
      %s13 = ssub.s32 16, 16
      %14 = vsyncadd [#allocation5], %s13
      %17 = dma.hbm_to_smem %s0, 16, [#allocation2], [#allocation5]
    $region5: #{tpu_custom_call.1} parent=1 // pred_fallthru
      _
    // Predicated region
    $region6: #{tpu_custom_call.1} parent=1 // pred_check
      _
    $region7: #{tpu_custom_call.1} parent=1 // pred_check_branch
      %19 = sbr.rel (0) target = $region9
    $region8: #{tpu_custom_call.1} parent=1 // pred_region
      %s21 = ssub.s32 256, 256
      %22 = vsyncadd [#allocation3], %s21
      %s24 = sshll.u32 [#allocation6], 4
      %s25 = int_to_ptr.vmem [resolvable:$true] %s24
      %27 = dma.hbm_to_vmem [thread:$0]  %s1, 256, %s25, [#allocation3]
    $region9: #{tpu_custom_call.1} parent=1 // pred_fallthru
      _
    // Predicated region
    $region10: #{tpu_custom_call.1} parent=1 // pred_check
      _
    $region11: #{tpu_custom_call.1} parent=1 // pred_check_branch
      %29 = sbr.rel (0) target = $region13
    $region12: #{tpu_custom_call.1} parent=1 // pred_region
      %30 = dma.done [#allocation5], 16
    $region13: #{tpu_custom_call.1} parent=1 // pred_fallthru
      _
    // Predicated region
    $region14: #{tpu_custom_call.1} parent=1 // pred_check
      _
    $region15: #{tpu_custom_call.1} parent=1 // pred_check_branch
      %32 = sbr.rel (0) target = $region17
    $region16: #{tpu_custom_call.1} parent=1 // pred_region
      %33 = dma.done [#allocation3], 256
    $region17: #{tpu_custom_call.1} parent=1 // pred_fallthru
      _
    %34 = sfence
    %s35 = sld [smem:[#allocation2]]
    %s36 = sld [smem:[#allocation2 + $0x1]]
    %v37 = vld [vmem:[#allocation6] sm:$0xff]
    %v38 = vld [vmem:[#allocation6 + $0x8] sm:$0xff]
    %v39 = vxor.u32 %v37, 2147483648
    %v40 = vxor.u32 %v38, 2147483648
    %v41 = vmul.f32 %v39, 1.442695
    %v42 = vpow.pop %v41
    %v43 = vmul.f32 %v40, 1.442695
    %v44 = vpow.pop %v43
    %v45 = vadd.f32 %v42, 1.0
    %v46 = vadd.f32 %v44, 1.0
    %v47 = vrcp.pop %v45
    %v48 = vmul.f32 1.0, %v47
    %v49 = vrcp.pop %v46
    %v50 = vmul.f32 1.0, %v49
    %v51 = vstv %s36
    %v52 = vmul.f32 %v48, %v51
    %v53 = vmul.f32 %v50, %v51
    %v54 = vstv %s35
    %v55 = vadd.f32 %v52, %v54
    %v56 = vadd.f32 %v53, %v54
    %57 = vst [vmem:[#allocation7] sm:$0xff] %v55
    %58 = vst [vmem:[#allocation7 + $0x8] sm:$0xff] %v56
    // Predicated region
    $region18: #{tpu_custom_call.1} parent=1 // pred_check
      _
    $region19: #{tpu_custom_call.1} parent=1 // pred_check_branch
      %60 = sbr.rel (0) target = $region21
    $region20: #{tpu_custom_call.1} parent=1 // pred_region
      %s62 = ssub.s32 256, 256
      %63 = vsyncadd [#allocation4], %s62
      %s65 = sshll.u32 [#allocation7], 4
      %s66 = int_to_ptr.vmem [resolvable:$true] %s65
      %68 = dma.vmem_to_hbm [thread:$0]  %s66, 256, %s2, [#allocation4]
    $region21: #{tpu_custom_call.1} parent=1 // pred_fallthru
      _
    // Predicated region
    $region22: #{tpu_custom_call.1} parent=1 // pred_check
      _
    $region23: #{tpu_custom_call.1} parent=1 // pred_check_branch
      %70 = sbr.rel (0) target = $region25
    $region24: #{tpu_custom_call.1} parent=1 // pred_region
      %71 = dma.done [#allocation4], 256
    $region25: #{tpu_custom_call.1} parent=1 // pred_fallthru
      _
    %72 = vsyncpa [#allocation3], 1
    %73 = vsyncpa [#allocation4], 1
    %74 = vsyncpa [#allocation5], 1

</llo_original>
